<compile_context>
chip_gen: v7x
topology: tpu7x:2x2x1
jax: 0.10.0
libtpu: 0.0.40
codegen_flags: <defaults>
</compile_context>

<pallas_src>
import functools
import math

import jax
import jax.numpy as jnp
from jax.experimental import pallas as pl
from jax.experimental.pallas import tpu as pltpu

_VP_SCALE = 1.7015043497085571    # VPGELU variance-preserving gain
_SQRT_HALF = 0.7071067811865476   # 1/sqrt(2)
_WS_EPS = 1e-4                    # WSConv2D eps buffer
_VMEM_LIMIT = 32 * 1024 * 1024    # explicit scoped-VMEM limit (>= v5e 16MiB default)


# ----------------------------- in-kernel math ------------------------------

def _erf(x):
    # Abramowitz & Stegun 7.1.26 (max abs err ~1.5e-7). The divide goes to the
    # EUP via pl.reciprocal(approx=True) so it co-issues with the exp.
    p = 0.3275911
    a1, a2, a3, a4, a5 = (0.254829592, -0.284496736, 1.421413741,
                          -1.453152027, 1.061405429)
    z = jnp.abs(x)
    t = pl.reciprocal(1.0 + p * z, approx=True)
    poly = ((((a5 * t + a4) * t + a3) * t + a2) * t + a1) * t
    e = 1.0 - poly * jnp.exp(-z * z)
    return jnp.where(x >= 0, e, -e)


def _vpgelu(x):
    # torch.nn.functional.gelu (exact, erf-based) * 1.7015043497085571
    return 0.5 * x * (1.0 + _erf(x * _SQRT_HALF)) * _VP_SCALE


# ------------------------------ Pallas kernels ------------------------------

def _conv1_kernel(p_ref, w_ref, o_ref, *, c_act):
    """One bf16 MXU matmul: patches @ [w_std | w_raw]; VPGELU on first c_act lanes."""
    y = jnp.dot(p_ref[...], w_ref[...], preferred_element_type=jnp.float32)
    g = _vpgelu(y)
    if c_act == y.shape[-1]:
        o_ref[...] = g.astype(o_ref.dtype)
    else:
        col = jax.lax.broadcasted_iota(jnp.int32, y.shape, 1)
        o_ref[...] = jnp.where(col < c_act, g, y).astype(o_ref.dtype)


def _conv2_kernel(a_ref, w_ref, id_ref, o_ref, *, br, wo):
    """conv2 on a halo'd activation row block: assemble the nine 3x3 taps in
    VMEM (9 accumulating bf16 MXU dots), add the residual, apply VPGELU."""
    c = a_ref.shape[-1]
    a = a_ref[0].astype(jnp.float32)              # (br+2, wo+2, c)
    w_all = w_ref[...]                            # (3, 3, c, cout) bf16
    acc = id_ref[0].astype(jnp.float32)           # (br*wo, cout) residual
    for kh in range(3):
        for kw in range(3):
            tap = a[kh:kh + br, kw:kw + wo, :].reshape(br * wo, c)
            acc = acc + jnp.dot(tap.astype(jnp.bfloat16), w_all[kh, kw],
                                preferred_element_type=jnp.float32)
    o_ref[0] = _vpgelu(acc).astype(o_ref.dtype)


# ------------------------------ helpers -------------------------------------

def _standardize_oihw(w, gain, eps):
    """WSConv2D.standardized_weights (f32, hoisted out of the kernels)."""
    fan_in = w.shape[1] * w.shape[2] * w.shape[3]
    mean = jnp.mean(w, axis=(1, 2, 3), keepdims=True)
    var = jnp.var(w, axis=(1, 2, 3), keepdims=True, ddof=1)    # torch.var: unbiased
    scale = jax.lax.rsqrt(jnp.maximum(var * fan_in, eps))
    return (w - mean) * scale * gain


def _oihw_to_k(w):
    """OIHW -> (kh*kw*cin, cout), matching the im2col patch ordering."""
    o, i, kh, kw = w.shape
    return jnp.transpose(w, (2, 3, 1, 0)).reshape(kh * kw * i, o)


def _extract_patches_3x3(x_nhwc, stride):
    """im2col for a 3x3 conv with padding=1. Returns ((N*Ho*Wo, 9*C), (Ho, Wo))."""
    n, h, w, c = x_nhwc.shape
    ho = (h - 1) // stride + 1
    wo = (w - 1) // stride + 1
    xp = jnp.pad(x_nhwc, ((0, 0), (1, 1), (1, 1), (0, 0)))
    cols = []
    for kh in range(3):
        for kw in range(3):
            sl = xp[:, kh:kh + stride * (ho - 1) + 1:stride,
                    kw:kw + stride * (wo - 1) + 1:stride, :]
            cols.append(sl)
    patches = jnp.stack(cols, axis=3).reshape(n * ho * wo, 9 * c)
    return patches, (ho, wo)


def _choose_bm(m, row_bytes, *, budget=12 << 20, min_steps=4, cap=1024):
    """Largest multiple-of-8 M-block fitting a double-buffered VMEM budget while
    keeping >= min_steps grid steps for megacore/pipelining."""
    bm = budget // max(1, 4 * row_bytes)          # in + out tiles, double-buffered
    bm = min(bm, cap, -(-m // min_steps))
    return max(8, (bm // 8) * 8)


def _choose_br(ho, wo, c, cout, n, *, budget=8 << 20, min_steps=4):
    """Row-block height for the halo'd conv2 input (must divide Ho)."""
    def vmem_cost(br):
        halo = (br + 2) * (wo + 2) * c
        rows = br * wo
        return 2 * (2 * halo + 2 * rows * cout + 4 * rows * cout) + 4 * halo
    divs = [d for d in range(1, ho + 1) if ho % d == 0]
    fit = [d for d in divs if vmem_cost(d) <= budget] or divs[:1]
    pref = [d for d in fit if n * (ho // d) >= min_steps]
    return max(pref) if pref else max(fit)


# ------------------------------ pallas_call wrappers ------------------------

def _run_conv1(patches, w_rhs, *, c_act):
    m, k = patches.shape
    slab_c = w_rhs.shape[1]
    bm = _choose_bm(m, row_bytes=2 * (k + slab_c))
    m_pad = -(-m // bm) * bm
    if m_pad != m:
        patches = jnp.pad(patches, ((0, m_pad - m), (0, 0)))

    cost = pl.CostEstimate(
        flops=2 * m_pad * k * slab_c,
        transcendentals=2 * m_pad * slab_c,
        bytes_accessed=2 * (m_pad * k + k * slab_c + m_pad * slab_c))

    # NOTE: the weight block is grid-invariant (constant index_map), so it is
    # only DMA'd once; single-buffering it (pl.Buffered(1)) would reclaim VMEM
    # on v7x but is left at the default depth for portability.
    slab = pl.pallas_call(
        functools.partial(_conv1_kernel, c_act=c_act),
        out_shape=jax.ShapeDtypeStruct((m_pad, slab_c), jnp.bfloat16),
        grid_spec=pltpu.PrefetchScalarGridSpec(
            num_scalar_prefetch=0, grid=(m_pad // bm,),
            in_specs=[pl.BlockSpec((bm, k), lambda i: (i, 0)),
                      pl.BlockSpec((k, slab_c), lambda i: (0, 0))],
            out_specs=pl.BlockSpec((bm, slab_c), lambda i: (i, 0))),
        compiler_params=pltpu.CompilerParams(
            dimension_semantics=("parallel",), vmem_limit_bytes=_VMEM_LIMIT),
        cost_estimate=cost,
    )(patches, w_rhs)
    return slab[:m]


def _run_conv2(act_nhwc, w_taps, identity, *, out_dtype):
    n, ho, wo, c = act_nhwc.shape
    cout = w_taps.shape[-1]
    br = _choose_br(ho, wo, c, cout, n)
    nblk = ho // br
    nb = n * nblk

    # Row blocks with a 1-pixel halo: ~(br+2)/br duplication instead of the 9x
    # im2col expansion; the 9 taps are assembled in VMEM by the kernel.
    ap = jnp.pad(act_nhwc, ((0, 0), (1, 1), (1, 1), (0, 0)))
    if nblk == 1:
        halo = ap
    else:
        halo = jnp.stack([ap[:, i * br:i * br + br + 2] for i in range(nblk)],
                         axis=1).reshape(nb, br + 2, wo + 2, c)
    ident = identity.reshape(nb, br * wo, cout)

    cost = pl.CostEstimate(
        flops=2 * nb * br * wo * 9 * c * cout,
        transcendentals=2 * nb * br * wo * cout,
        bytes_accessed=(halo.size * halo.dtype.itemsize
                        + w_taps.size * w_taps.dtype.itemsize
                        + ident.size * ident.dtype.itemsize
                        + nb * br * wo * cout * jnp.dtype(out_dtype).itemsize))

    out = pl.pallas_call(
        functools.partial(_conv2_kernel, br=br, wo=wo),
        out_shape=jax.ShapeDtypeStruct((nb, br * wo, cout), out_dtype),
        grid_spec=pltpu.PrefetchScalarGridSpec(
            num_scalar_prefetch=0, grid=(nb,),
            in_specs=[pl.BlockSpec((1, br + 2, wo + 2, c), lambda i: (i, 0, 0, 0)),
                      pl.BlockSpec((3, 3, c, cout), lambda i: (0, 0, 0, 0)),
                      pl.BlockSpec((1, br * wo, cout), lambda i: (i, 0, 0))],
            out_specs=pl.BlockSpec((1, br * wo, cout), lambda i: (i, 0, 0))),
        compiler_params=pltpu.CompilerParams(
            dimension_semantics=("parallel",), vmem_limit_bytes=_VMEM_LIMIT),
        cost_estimate=cost,
    )(halo, w_taps, ident)
    return out.reshape(n, ho, wo, cout)


def basic_block_forward(x, w1, gain1, w2, gain2, *, stride, eps=_WS_EPS):
    """BasicBlock.forward. x: NCHW; w*: OIHW; gain*: (C_out,1,1,1)."""
    n, cin, h, w = x.shape
    cout = w1.shape[0]
    x_nhwc = jnp.transpose(x, (0, 2, 3, 1))
    need_proj = (stride != 1) or (cin != cout)

    # Weight standardization hoisted out of the kernels (tiny one-shot f32 op).
    w1_rhs = _oihw_to_k(_standardize_oihw(w1, gain1, eps))
    if need_proj:
        # Residual downsample uses the RAW conv1 weight (matches the PyTorch
        # module); fuse it into the same matmul: RHS = [w_std | w_raw].
        w1_rhs = jnp.concatenate([w1_rhs, _oihw_to_k(w1)], axis=1)
    w1_rhs = w1_rhs.astype(jnp.bfloat16)
    w2_taps = jnp.transpose(_standardize_oihw(w2, gain2, eps),
                            (2, 3, 1, 0)).astype(jnp.bfloat16)    # (3,3,cout,cout)

    # conv1 (stride=s) + VPGELU (+ raw-weight projection), one fused kernel.
    p1, (ho, wo) = _extract_patches_3x3(x_nhwc.astype(jnp.bfloat16), stride)
    slab = _run_conv1(p1, w1_rhs, c_act=cout)          # (m, cout | 2*cout) bf16

    act_nhwc = slab[:, :cout].reshape(n, ho, wo, cout)
    identity = slab[:, cout:] if need_proj else x_nhwc.reshape(n * h * w, cin)

    # conv2 (stride=1) + residual add + VPGELU, halo-blocked (no 9x im2col).
    out = _run_conv2(act_nhwc, w2_taps, identity, out_dtype=x.dtype)
    return jnp.transpose(out, (0, 3, 1, 2))


# ------------------------------ pure-JAX reference --------------------------

def _vpgelu_ref(x):
    return jax.nn.gelu(x, approximate=False) * _VP_SCALE


def basic_block_reference(x, w1, gain1, w2, gain2, *, stride, eps=_WS_EPS):
    def conv(a, wt, s):
        return jax.lax.conv_general_dilated(
            a, wt, window_strides=(s, s), padding=((1, 1), (1, 1)),
            dimension_numbers=("NCHW", "OIHW", "NCHW"),
            precision=jax.lax.Precision.HIGHEST)

    out = _vpgelu_ref(conv(x, _standardize_oihw(w1, gain1, eps), stride))
    out = conv(out, _standardize_oihw(w2, gain2, eps), 1)
    if stride != 1 or x.shape[1] != out.shape[1]:
        identity = conv(x, w1, stride)
    else:
        identity = x
    return _vpgelu_ref(out + identity)


# ------------------------------ test ----------------------------------------

if __name__ == "__main__":
    key = jax.random.PRNGKey(0)

    def xavier_normal(k, cout, cin, kh, kw):
        std = math.sqrt(2.0 / (cin * kh * kw + cout * kh * kw))
        return std * jax.random.normal(k, (cout, cin, kh, kw), dtype=jnp.float32)

    def run_case(k, n, cin, cout, hw, stride):
        k1, k2, k3, k4, k5 = jax.random.split(k, 5)
        x = jax.random.normal(k1, (n, cin, hw, hw), dtype=jnp.float32)
        w1 = xavier_normal(k2, cout, cin, 3, 3)
        w2 = xavier_normal(k3, cout, cout, 3, 3)
        g1 = 1.0 + 0.1 * jax.random.normal(k4, (cout, 1, 1, 1), dtype=jnp.float32)
        g2 = 1.0 + 0.1 * jax.random.normal(k5, (cout, 1, 1, 1), dtype=jnp.float32)

        y = jax.block_until_ready(
            basic_block_forward(x, w1, g1, w2, g2, stride=stride))
        ref = basic_block_reference(x, w1, g1, w2, g2, stride=stride)

        ho = (hw - 1) // stride + 1
        assert y.shape == ref.shape == (n, cout, ho, ho), (y.shape, ref.shape)
        # Tolerance sized for bf16 MXU inputs + approx-EUP reciprocal (per perf
        # review) vs. the HIGHEST-precision f32 XLA conv reference; real
        # layout/semantics bugs produce O(1) errors.
        max_err = float(jnp.max(jnp.abs(y - ref)))
        assert jnp.allclose(y, ref, atol=3e-2, rtol=3e-2), f"max abs err = {max_err}"

    k_a, k_b = jax.random.split(key)
    run_case(k_a, n=2, cin=4, cout=8, hw=16, stride=2)   # downsample/projection path
    run_case(k_b, n=2, cin=8, cout=8, hw=16, stride=1)   # plain residual path

    print("KERNEL_OK")
</pallas_src>

<mosaic_0001>
module attributes {stable_mosaic.version = 11 : i64} {
  func.func @_conv1_kernel(%arg0: i32, %arg1: memref<32x36xbf16, #tpu.memory_space<vmem>>, %arg2: memref<36x16xbf16, #tpu.memory_space<vmem>>, %arg3: memref<32x16xbf16, #tpu.memory_space<vmem>>) attributes {dimension_semantics = [#tpu.dimension_semantics<parallel>], iteration_bounds = array<i64: 4>, scalar_prefetch = 0 : i64, scratch_operands = 0 : i64, tpu.core_type = #tpu.core_type<tc>, window_params = [{transform_indices = @transform_0, window_bounds = array<i64: 32, 36>}, {pipeline_mode = #tpu.pipeline_mode<synchronous>, transform_indices = @transform_1, window_bounds = array<i64: 36, 16>}, {transform_indices = @transform_2, window_bounds = array<i64: 32, 16>}]} {
    %c0 = arith.constant 0 : index
    %c0_0 = arith.constant 0 : index
    %0 = vector.load %arg1[%c0, %c0_0] : memref<32x36xbf16, #tpu.memory_space<vmem>>, vector<32x36xbf16>
    %c0_1 = arith.constant 0 : index
    %c0_2 = arith.constant 0 : index
    %1 = vector.load %arg2[%c0_1, %c0_2] : memref<36x16xbf16, #tpu.memory_space<vmem>>, vector<36x16xbf16>
    %cst = arith.constant dense<0.000000e+00> : vector<32x16xf32>
    %2 = tpu.matmul %0, %1, %cst {dimension_numbers = #tpu.dot_dimension_numbers<[1], [0], [0], [1], [0, 0, 1, 1], [], []>} : vector<32x36xbf16>, vector<36x16xbf16>, vector<32x16xf32> -> vector<32x16xf32>
    %cst_3 = arith.constant 5.000000e-01 : f32
    %3 = vector.broadcast %cst_3 : f32 to vector<32x16xf32>
    %4 = arith.mulf %3, %2 : vector<32x16xf32>
    %cst_4 = arith.constant 0.707106769 : f32
    %5 = vector.broadcast %cst_4 : f32 to vector<32x16xf32>
    %6 = arith.mulf %2, %5 : vector<32x16xf32>
    %7 = math.absf %6 : vector<32x16xf32>
    %cst_5 = arith.constant 0.327591091 : f32
    %8 = vector.broadcast %cst_5 : f32 to vector<32x16xf32>
    %9 = arith.mulf %8, %7 : vector<32x16xf32>
    %cst_6 = arith.constant 1.000000e+00 : f32
    %10 = vector.broadcast %cst_6 : f32 to vector<32x16xf32>
    %11 = arith.addf %10, %9 : vector<32x16xf32>
    %12 = tpu.reciprocal %11 {approx = true} : vector<32x16xf32> -> vector<32x16xf32>
    %cst_7 = arith.constant 1.06140542 : f32
    %13 = vector.broadcast %cst_7 : f32 to vector<32x16xf32>
    %14 = arith.mulf %13, %12 : vector<32x16xf32>
    %cst_8 = arith.constant -1.45315206 : f32
    %15 = vector.broadcast %cst_8 : f32 to vector<32x16xf32>
    %16 = arith.addf %14, %15 : vector<32x16xf32>
    %17 = arith.mulf %16, %12 : vector<32x16xf32>
    %cst_9 = arith.constant 1.42141378 : f32
    %18 = vector.broadcast %cst_9 : f32 to vector<32x16xf32>
    %19 = arith.addf %17, %18 : vector<32x16xf32>
    %20 = arith.mulf %19, %12 : vector<32x16xf32>
    %cst_10 = arith.constant -0.284496725 : f32
    %21 = vector.broadcast %cst_10 : f32 to vector<32x16xf32>
    %22 = arith.addf %20, %21 : vector<32x16xf32>
    %23 = arith.mulf %22, %12 : vector<32x16xf32>
    %cst_11 = arith.constant 0.254829586 : f32
    %24 = vector.broadcast %cst_11 : f32 to vector<32x16xf32>
    %25 = arith.addf %23, %24 : vector<32x16xf32>
    %26 = arith.mulf %25, %12 : vector<32x16xf32>
    %cst_12 = arith.constant 0.000000e+00 : f32
    %27 = vector.broadcast %cst_12 : f32 to vector<32x16xf32>
    %28 = arith.subf %27, %7 : vector<32x16xf32>
    %29 = arith.mulf %28, %7 : vector<32x16xf32>
    %30 = math.exp %29 : vector<32x16xf32>
    %31 = arith.mulf %26, %30 : vector<32x16xf32>
    %cst_13 = arith.constant 1.000000e+00 : f32
    %32 = vector.broadcast %cst_13 : f32 to vector<32x16xf32>
    %33 = arith.subf %32, %31 : vector<32x16xf32>
    %cst_14 = arith.constant 0.000000e+00 : f32
    %34 = vector.broadcast %cst_14 : f32 to vector<32x16xf32>
    %35 = arith.cmpf oge, %6, %34 : vector<32x16xf32>
    %cst_15 = arith.constant 0.000000e+00 : f32
    %36 = vector.broadcast %cst_15 : f32 to vector<32x16xf32>
    %37 = arith.subf %36, %33 : vector<32x16xf32>
    %38 = arith.select %35, %33, %37 : vector<32x16xi1>, vector<32x16xf32>
    %cst_16 = arith.constant 1.000000e+00 : f32
    %39 = vector.broadcast %cst_16 : f32 to vector<32x16xf32>
    %40 = arith.addf %39, %38 : vector<32x16xf32>
    %41 = arith.mulf %4, %40 : vector<32x16xf32>
    %cst_17 = arith.constant 1.70150435 : f32
    %42 = vector.broadcast %cst_17 : f32 to vector<32x16xf32>
    %43 = arith.mulf %41, %42 : vector<32x16xf32>
    %44 = tpu.iota {dimensions = array<i32: 1>} : vector<32x16xi32>
    %c8_i32 = arith.constant 8 : i32
    %45 = vector.broadcast %c8_i32 : i32 to vector<32x16xi32>
    %46 = arith.cmpi slt, %44, %45 : vector<32x16xi32>
    %47 = arith.select %46, %43, %2 : vector<32x16xi1>, vector<32x16xf32>
    %48 = arith.truncf %47 : vector<32x16xf32> to vector<32x16xbf16>
    %c0_18 = arith.constant 0 : index
    %c0_19 = arith.constant 0 : index
    %49 = vector.load %arg3[%c0_18, %c0_19] : memref<32x16xbf16, #tpu.memory_space<vmem>>, vector<32x16xbf16>
    tpu.vector_store %arg3[%c0_18, %c0_19], %48 {strides = array<i32>} : memref<32x16xbf16, #tpu.memory_space<vmem>>, vector<32x16xbf16>,
    return
  }
  func.func @transform_0(%arg0: i32) -> (i32, i32) {
    %c0_i32 = arith.constant 0 : i32
    %c0_i32_0 = arith.constant 0 : i32
    return %arg0, %c0_i32 : i32, i32
  }
  func.func @transform_1(%arg0: i32) -> (i32, i32) {
    %c0_i32 = arith.constant 0 : i32
    %c0_i32_0 = arith.constant 0 : i32
    %c0_i32_1 = arith.constant 0 : i32
    return %c0_i32, %c0_i32_0 : i32, i32
  }
  func.func @transform_2(%arg0: i32) -> (i32, i32) {
    %c0_i32 = arith.constant 0 : i32
    %c0_i32_0 = arith.constant 0 : i32
    return %arg0, %c0_i32 : i32, i32
  }
}

</mosaic_0001>

<llo_original>
// kernel: tpu_custom_call.1
$region0: #{tpu_custom_call.1}
  #allocation0 [shape = 'u32[]', space=smem, size = 0x4, offset = 0x4, fixed_abs, tag = 'smem constant byte address 0x4 - core index']
  #allocation1 [shape = 'u32[144,128]{1,0:T(1,128)}', space=vmem, size = 0x12000, scoped, tag = 'internal scratch']
  %s0 = inlined_call_operand.vmem [shape: bf16[128,36], index: 0, kind: input, shape index: {}]
  %s1 = inlined_call_operand.vmem [shape: bf16[36,16], index: 1, kind: input, shape index: {}]
  %s2 = inlined_call_operand.vmem [shape: bf16[128,16], index: 2, kind: output, shape index: {}]
  %s3 = sld [smem:[#allocation0]]
  $region41: #{tpu_custom_call.1} parent=0
    _
  %s5 = ssub.s32 1, %s3
  %s6 = scalar_select 0, %s5, %s3
  loop: start=0, step=1, limit=6
  $region2: #{tpu_custom_call.1} parent=0 // loop_pre_header
    _
  $region3: #{tpu_custom_call.1} parent=0 // loop_header
    %s8 = sphi 0, %s12
    %p9 = scmp.ge.s32.totalorder %s8, 6
    %s18 = sphi 0, %s20
    %s21 = sphi 0, %s18
    %s22 = sphi 0, %s21
    %s38 = sphi 0, %s22
    %s42 = sphi 0, %s42
    %s44 = sphi 0, %s42
    %s45 = sphi 0, %s44
    %s59 = sphi 0, %s45
    %s65 = sphi 0, %s67
    %s68 = sphi 0, %s65
    %s69 = sphi 0, %s68
    %s85 = sphi 0, %s69
  $region4: #{tpu_custom_call.1} parent=0 // loop_header_branch
    %11 = sbr.rel (%p9) target = $region8
  $region5: #{tpu_custom_call.1} parent=0 // loop_body
    %s13 = ssub.s32 %s8, 1
    %s14 = ssub.s32 %s8, 2
    %s15 = sadd.s32 %s8, 1
    %s16 = ssub.s32 %s8, %s15
    %p17 = scmp.eq.s32.totalorder %s16, 0
    %s19 = sadd.s32 %s18, 1
    %s20 = scalar_select %p17, %s18, %s19
    %p23 = pneg %p17
    %p24 = scmp.eq.s32.totalorder %s8, 3
    %p25 = por %p23, %p24
    %p26 = scmp.ne.s32.totalorder %s18, %s21
    %p27 = scmp.eq.s32.totalorder %s8, 0
    %p28 = por %p26, %p27
    %p29 = scmp.ne.s32.totalorder %s18, %s21
    %p30 = scmp.eq.s32.totalorder %s13, 3
    %p31 = por %p29, %p30
    %p32 = scmp.ne.s32.totalorder %s21, %s22
    %p33 = scmp.eq.s32.totalorder %s13, 0
    %p34 = por %p32, %p33
    %p35 = scmp.ne.s32.totalorder %s21, %s22
    %p36 = scmp.eq.s32.totalorder %s14, 3
    %p37 = por %p35, %p36
    %p39 = scmp.ne.s32.totalorder %s22, %s38
    %p40 = scmp.eq.s32.totalorder %s14, 0
    %p41 = por %p39, %p40
    %s43 = sadd.s32 %s42, 1
    %p46 = scmp.eq.s32.totalorder %s8, 3
    %p47 = scmp.ne.s32.totalorder %s42, %s44
    %p48 = scmp.eq.s32.totalorder %s8, 0
    %p49 = por %p47, %p48
    %p50 = scmp.ne.s32.totalorder %s42, %s44
    %p51 = scmp.eq.s32.totalorder %s13, 3
    %p52 = por %p50, %p51
    %p53 = scmp.ne.s32.totalorder %s44, %s45
    %p54 = scmp.eq.s32.totalorder %s13, 0
    %p55 = por %p53, %p54
    %p56 = scmp.ne.s32.totalorder %s44, %s45
    %p57 = scmp.eq.s32.totalorder %s14, 3
    %p58 = por %p56, %p57
    %p60 = scmp.ne.s32.totalorder %s45, %s59
    %p61 = scmp.eq.s32.totalorder %s14, 0
    %p62 = por %p60, %p61
    %s63 = ssub.s32 %s8, %s15
    %p64 = scmp.eq.s32.totalorder %s63, 0
    %s66 = sadd.s32 %s65, 1
    %s67 = scalar_select %p64, %s65, %s66
    %p70 = pneg %p64
    %p71 = scmp.eq.s32.totalorder %s8, 3
    %p72 = por %p70, %p71
    %p73 = scmp.ne.s32.totalorder %s65, %s68
    %p74 = scmp.eq.s32.totalorder %s8, 0
    %p75 = por %p73, %p74
    %p76 = scmp.ne.s32.totalorder %s65, %s68
    %p77 = scmp.eq.s32.totalorder %s13, 3
    %p78 = por %p76, %p77
    %p79 = scmp.ne.s32.totalorder %s68, %s69
    %p80 = scmp.eq.s32.totalorder %s13, 0
    %p81 = por %p79, %p80
    %p82 = scmp.ne.s32.totalorder %s68, %s69
    %p83 = scmp.eq.s32.totalorder %s14, 3
    %p84 = por %p82, %p83
    %p86 = scmp.ne.s32.totalorder %s69, %s85
    %p87 = scmp.eq.s32.totalorder %s14, 0
    %p88 = por %p86, %p87
    %p89 = scmp.le.s32.totalorder 1, %s8
    %p90 = scmp.lt.s32.totalorder %s8, 5
    %p91 = pnand %p89, %p90
    %p92 = pneg %p91
    // Predicated region
    $region9: #{tpu_custom_call.1} parent=5 // pred_check
      _
    $region10: #{tpu_custom_call.1} parent=5 // pred_check_branch
      %94 = sbr.rel (%p91) target = $region12
    $region11: #{tpu_custom_call.1} parent=5 // pred_region
      %s95 = ssub.s32 %s8, 1
      // Predicated region
      $region13: #{tpu_custom_call.1} parent=11 // pred_check
        %p96 = pneg %p55
      $region14: #{tpu_custom_call.1} parent=11 // pred_check_branch
        %98 = sbr.rel (%p96) target = $region16
      $region15: #{tpu_custom_call.1} parent=11 // pred_region
        _
      $region16: #{tpu_custom_call.1} parent=11 // pred_fallthru
        _
    $region12: #{tpu_custom_call.1} parent=5 // pred_fallthru
      _
    %p99 = scmp.lt.s32.totalorder %s8, 4
    // Predicated region
    $region17: #{tpu_custom_call.1} parent=5 // pred_check
      %p100 = pneg %p99
    $region18: #{tpu_custom_call.1} parent=5 // pred_check_branch
      %102 = sbr.rel (%p100) target = $region20
    $region19: #{tpu_custom_call.1} parent=5 // pred_region
      // Predicated region
      $region21: #{tpu_custom_call.1} parent=19 // pred_check
        %p103 = pneg %p28
      $region22: #{tpu_custom_call.1} parent=19 // pred_check_branch
        %105 = sbr.rel (%p103) target = $region24
      $region23: #{tpu_custom_call.1} parent=19 // pred_region
        %s106 = smul.u32 4, %s8
        %p107 = scmp.lt.s32.totalorder %s106, 15
        %s108 = scalar_select %p107, %s106, 15
        %s109 = smul.addr %s108, 4
        %s110 = scalar_lea.vmem %s0, %s109
        %s111 = smul.u32 4, %s8
      $region24: #{tpu_custom_call.1} parent=19 // pred_fallthru
        _
    $region20: #{tpu_custom_call.1} parent=5 // pred_fallthru
      _
    %p112 = scmp.le.s32.totalorder 1, %s8
    %p113 = scmp.lt.s32.totalorder %s8, 5
    %p114 = pnand %p112, %p113
    %p115 = pneg %p114
    // Predicated region
    $region25: #{tpu_custom_call.1} parent=5 // pred_check
      _
    $region26: #{tpu_custom_call.1} parent=5 // pred_check_branch
      %117 = sbr.rel (%p114) target = $region28
    $region27: #{tpu_custom_call.1} parent=5 // pred_region
      %s118 = ssub.s32 %s8, 1
      %s119 = smul.u32 4, %s13
      %p120 = scmp.lt.s32.totalorder %s119, 15
      %s121 = scalar_select %p120, %s119, 15
      %s122 = smul.addr %s121, 4
      %s123 = scalar_lea.vmem %s0, %s122
      %p124 = pneg %p34
      %p125 = pneg %p31
      %p126 = pneg %p55
      %p127 = pneg %p52
      %p128 = pneg %p81
      %p129 = pneg %p78
      %s130 = smul.u32 4, %s13
      %p131 = scmp.lt.s32.totalorder %s130, 15
      %s132 = scalar_select %p131, %s130, 15
      %s133 = smul.addr %s132, 4
      %s134 = scalar_lea.vmem %s2, %s133
      %s135 = smul.u32 4, %s13
      %p136 = scmp.lt.s32.totalorder %s135, 15
      %s137 = scalar_select %p136, %s135, 15
      %s138 = smul.addr %s137, 4
      %s139 = scalar_lea.vmem %s0, %s138
      %s140 = smul.u32 4, %s13
      %s141 = smul.u32 4, %s13
      %p142 = scmp.lt.s32.totalorder %s141, 15
      %s143 = scalar_select %p142, %s141, 15
      %s144 = smul.addr %s143, 4
      %s145 = scalar_lea.vmem %s2, %s144
      %s146 = smul.u32 4, %s13
      %v148 = vld [vmem:[%s139] sm:$0xf]
      %v149 = vld [vmem:[%s139 + $0x4] sm:$0xf]
      %v150 = vld [vmem:[%s139 + $0x8] sm:$0xf]
      %v151 = vld [vmem:[%s139 + $0xc] sm:$0xf]
      %v152 = vld [vmem:[%s1] sm:$0xf]
      %v153 = vld [vmem:[%s1 + $0x4] sm:$0xf]
      %v154 = vld [vmem:[%s1 + $0x8] sm:$0xf]
      %v155 = vld [vmem:[%s1 + $0xc] sm:$0xf]
      %v156 = vld [vmem:[%s1 + $0x10] sm:$0x3]
      %v161 = vunpack.c.l.b16 %v148
      %v162 = vunpack.c.l.b16 %v149
      %v163 = vunpack.c.l.b16 %v150
      %v164 = vunpack.c.l.b16 %v151
      %v165 = vpack.c.b16 %v162, %v161
      %v166 = vpack.c.b16 %v164, %v163
      %v172 = vunpack.c.l.b16 %v152
      %v173 = vunpack.c.l.b16 %v153
      %v174 = vunpack.c.l.b16 %v154
      %v175 = vunpack.c.l.b16 %v155
      %v176 = vunpack.c.l.b16 %v156
      %v177 = vpack.c.b16 %v173, %v172
      %v178 = vpack.c.b16 %v175, %v174
      %v179 = vpack.c.b16 %v176, %v176
      %vm182 = vcmask 293888
      %v184 = vsel %vm182, %v165, 0
      %v187 = vsel %vm182, %v166, 0
      %vm189 = vcmask 1041408
      %v191 = vsel %vm189, %v179, 0
      %193 = vmatprep.subr.bf16.mxu0 0
      %194 = vmatpush1.bf16.msra.mxu0 %v177
      %195 = vmatprep.subr.bf16.mxu0 0
      %196 = vmatpush1.bf16.msra.mxu0 %v178
      %197 = vmatprep.subr.bf16.mxu0 0
      %198 = vmatpush1.bf16.msra.mxu0 %v191
      %199 = vmatprep.subr.bf16.mxu0 0
      %200 = vmatpush1.bf16.msra.mxu0 0
      %201 = vmatprep.subr.bf16.mxu0 0
      %202 = vmatpush1.bf16.msra.mxu0 0
      %203 = vmatprep.subr.bf16.mxu0 0
      %204 = vmatpush1.bf16.msra.mxu0 0
      %205 = vmatprep.subr.bf16.mxu0 0
      %206 = vmatpush1.bf16.msra.mxu0 0
      %207 = vmatprep.subr.bf16.mxu0 0
      %208 = vmatpush1.bf16.msra.mxu0 0
      %209 = vmatprep.subr.bf16.mxu0 0
      %210 = vmatpush1.bf16.msra.mxu0 0
      %211 = vmatprep.subr.bf16.mxu0 0
      %212 = vmatpush1.bf16.msra.mxu0 0
      %213 = vmatprep.subr.bf16.mxu0 0
      %214 = vmatpush1.bf16.msra.mxu0 0
      %215 = vmatprep.subr.bf16.mxu0 0
      %216 = vmatpush1.bf16.msra.mxu0 0
      %217 = vmatprep.subr.bf16.mxu0 0
      %218 = vmatpush1.bf16.msra.mxu0 0
      %219 = vmatprep.subr.bf16.mxu0 0
      %220 = vmatpush1.bf16.msra.mxu0 0
      %221 = vmatprep.subr.bf16.mxu0 0
      %222 = vmatpush1.bf16.msra.mxu0 0
      %223 = vmatprep.subr.bf16.mxu0 0
      %224 = vmatpush1.bf16.msra.mxu0 0
      %225 = vmatprep.mubr.bf16.mxu0 0
      %226 = vmatmul.mubr.bf16.gmra.mrb[0].mxu0 %v184
      %v227 = vpop.f32.mrb[0].mxu0
      %v228 = vadd.f32 0.0, %v227
      %v229 = vpop.f32.mrb[0].mxu0
      %v230 = vpop.f32.mrb[0].mxu0
      %v231 = vadd.f32 0.0, %v230
      %v232 = vpop.f32.mrb[0].mxu0
      %233 = vmatprep.mubr.bf16.mxu0 0
      %234 = vmatmul.mubr.bf16.gmra.mrb[0].mxu0 %v187
      %v235 = vpop.f32.mrb[0].mxu0
      %v236 = vadd.f32 0.0, %v235
      %v237 = vpop.f32.mrb[0].mxu0
      %v238 = vpop.f32.mrb[0].mxu0
      %v239 = vadd.f32 0.0, %v238
      %v240 = vpop.f32.mrb[0].mxu0
      %241 = vdwg.mxu0
      %v242 = vmul.f32 %v228, 0.5
      %v243 = vmul.f32 %v231, 0.5
      %v244 = vmul.f32 %v236, 0.5
      %v245 = vmul.f32 %v239, 0.5
      %v246 = vmul.f32 %v228, 0.70710677
      %v247 = vmul.f32 %v231, 0.70710677
      %v248 = vmul.f32 %v236, 0.70710677
      %v249 = vmul.f32 %v239, 0.70710677
      %v250 = vand.u32 2147483647, %v246
      %v251 = vand.u32 2147483647, %v247
      %v252 = vand.u32 2147483647, %v248
      %v253 = vand.u32 2147483647, %v249
      %v254 = vmul.f32 %v250, 0.3275911
      %v255 = vmul.f32 %v251, 0.3275911
      %v256 = vmul.f32 %v252, 0.3275911
      %v257 = vmul.f32 %v253, 0.3275911
      %v258 = vadd.f32 %v254, 1.0
      %v259 = vadd.f32 %v255, 1.0
      %v260 = vadd.f32 %v256, 1.0
      %v261 = vadd.f32 %v257, 1.0
      %v262 = vrcp.pop %v258
      %v263 = vrcp.pop %v259
      %v264 = vrcp.pop %v260
      %v265 = vrcp.pop %v261
      %v266 = vmul.f32 %v262, 1.0614054
      %v267 = vmul.f32 %v263, 1.0614054
      %v268 = vmul.f32 %v264, 1.0614054
      %v269 = vmul.f32 %v265, 1.0614054
      %v270 = vadd.f32 %v266, -1.4531521
      %v271 = vadd.f32 %v267, -1.4531521
      %v272 = vadd.f32 %v268, -1.4531521
      %v273 = vadd.f32 %v269, -1.4531521
      %v274 = vmul.f32 %v270, %v262
      %v275 = vmul.f32 %v271, %v263
      %v276 = vmul.f32 %v272, %v264
      %v277 = vmul.f32 %v273, %v265
      %v278 = vadd.f32 %v274, 1.4214138
      %v279 = vadd.f32 %v275, 1.4214138
      %v280 = vadd.f32 %v276, 1.4214138
      %v281 = vadd.f32 %v277, 1.4214138
      %v282 = vmul.f32 %v278, %v262
      %v283 = vmul.f32 %v279, %v263
      %v284 = vmul.f32 %v280, %v264
      %v285 = vmul.f32 %v281, %v265
      %v286 = vadd.f32 %v282, -0.28449672
      %v287 = vadd.f32 %v283, -0.28449672
      %v288 = vadd.f32 %v284, -0.28449672
      %v289 = vadd.f32 %v285, -0.28449672
      %v290 = vmul.f32 %v286, %v262
      %v291 = vmul.f32 %v287, %v263
      %v292 = vmul.f32 %v288, %v264
      %v293 = vmul.f32 %v289, %v265
      %v294 = vadd.f32 %v290, 0.2548296
      %v295 = vadd.f32 %v291, 0.2548296
      %v296 = vadd.f32 %v292, 0.2548296
      %v297 = vadd.f32 %v293, 0.2548296
      %v298 = vmul.f32 %v294, %v262
      %v299 = vmul.f32 %v295, %v263
      %v300 = vmul.f32 %v296, %v264
      %v301 = vmul.f32 %v297, %v265
      %v302 = vsub.f32 0.0, %v250
      %v303 = vsub.f32 0.0, %v251
      %v304 = vsub.f32 0.0, %v252
      %v305 = vsub.f32 0.0, %v253
      %v306 = vmul.f32 %v302, %v250
      %v307 = vmul.f32 %v303, %v251
      %v308 = vmul.f32 %v304, %v252
      %v309 = vmul.f32 %v305, %v253
      %v310 = vmul.f32 %v306, 1.442695
      %v311 = vpow.pop %v310
      %v312 = vmul.f32 %v307, 1.442695
      %v313 = vpow.pop %v312
      %v314 = vmul.f32 %v308, 1.442695
      %v315 = vpow.pop %v314
      %v316 = vmul.f32 %v309, 1.442695
      %v317 = vpow.pop %v316
      %v318 = vmul.f32 %v298, %v311
      %v319 = vmul.f32 %v299, %v313
      %v320 = vmul.f32 %v300, %v315
      %v321 = vmul.f32 %v301, %v317
      %v322 = vsub.f32 1.0, %v318
      %v323 = vsub.f32 1.0, %v319
      %v324 = vsub.f32 1.0, %v320
      %v325 = vsub.f32 1.0, %v321
      %vm326 = vcmp.ge.f32.partialorder %v246, 0.0
      %vm327 = vcmp.ge.f32.partialorder %v247, 0.0
      %vm328 = vcmp.ge.f32.partialorder %v248, 0.0
      %vm329 = vcmp.ge.f32.partialorder %v249, 0.0
      %v330 = vsub.f32 0.0, %v322
      %v331 = vsub.f32 0.0, %v323
      %v332 = vsub.f32 0.0, %v324
      %v333 = vsub.f32 0.0, %v325
      %v334 = vsel %vm326, %v322, %v330
      %v335 = vsel %vm327, %v323, %v331
      %v336 = vsel %vm328, %v324, %v332
      %v337 = vsel %vm329, %v325, %v333
      %v338 = vadd.f32 %v334, 1.0
      %v339 = vadd.f32 %v335, 1.0
      %v340 = vadd.f32 %v336, 1.0
      %v341 = vadd.f32 %v337, 1.0
      %v342 = vmul.f32 %v242, %v338
      %v343 = vmul.f32 %v243, %v339
      %v344 = vmul.f32 %v244, %v340
      %v345 = vmul.f32 %v245, %v341
      %v346 = vmul.f32 %v342, 1.7015043
      %v347 = vmul.f32 %v343, 1.7015043
      %v348 = vmul.f32 %v344, 1.7015043
      %v349 = vmul.f32 %v345, 1.7015043
      %v350 = vlaneseq
      %v351 = vand.u32 %v350, 127
      %vm352 = vcmp.lt.s32.totalorder %v351, 8
      %v353 = vsel %vm352, %v346, %v228
      %v354 = vsel %vm352, %v347, %v231
      %v355 = vsel %vm352, %v348, %v236
      %v356 = vsel %vm352, %v349, %v239
      %v357 = vpack.c.bf16 %v354, %v353
      %v358 = vpack.c.bf16 %v356, %v355
      %v361 = vunpack.c.l.b16 %v357
      %v362 = vunpack.c.h.b16 %v357
      %v363 = vunpack.c.l.b16 %v358
      %v364 = vunpack.c.h.b16 %v358
      %v365 = vpack.c.b16 %v361, %v361
      %v366 = vpack.c.b16 %v362, %v362
      %v367 = vpack.c.b16 %v363, %v363
      %v368 = vpack.c.b16 %v364, %v364
      %vm373 = vcmask 125952
      %374 = vst.msk [vmem:[%s145] sm:$0xf] %vm373, %v365
      %375 = vst.msk [vmem:[%s145 + $0x4] sm:$0xf] %vm373, %v366
      %376 = vst.msk [vmem:[%s145 + $0x8] sm:$0xf] %vm373, %v367
      %377 = vst.msk [vmem:[%s145 + $0xc] sm:$0xf] %vm373, %v368
      %s378 = smul.u32 4, %s13
      %p379 = scmp.lt.s32.totalorder %s378, 15
      %s380 = scalar_select %p379, %s378, 15
      %s381 = smul.addr %s380, 4
      %s382 = scalar_lea.vmem %s2, %s381
      // Predicated region
      $region29: #{tpu_custom_call.1} parent=27 // pred_check
        %p383 = pneg %p78
      $region30: #{tpu_custom_call.1} parent=27 // pred_check_branch
        %385 = sbr.rel (%p383) target = $region32
      $region31: #{tpu_custom_call.1} parent=27 // pred_region
        %s386 = smul.u32 4, %s13
      $region32: #{tpu_custom_call.1} parent=27 // pred_fallthru
        _
    $region28: #{tpu_custom_call.1} parent=5 // pred_fallthru
      _
    %p387 = scmp.le.s32.totalorder 2, %s8
    // Predicated region
    $region33: #{tpu_custom_call.1} parent=5 // pred_check
      %p388 = pneg %p387
    $region34: #{tpu_custom_call.1} parent=5 // pred_check_branch
      %390 = sbr.rel (%p388) target = $region36
    $region35: #{tpu_custom_call.1} parent=5 // pred_region
      %s391 = ssub.s32 %s8, 2
      // Predicated region
      $region37: #{tpu_custom_call.1} parent=35 // pred_check
        %p392 = pneg %p84
      $region38: #{tpu_custom_call.1} parent=35 // pred_check_branch
        %394 = sbr.rel (%p392) target = $region40
      $region39: #{tpu_custom_call.1} parent=35 // pred_region
        %s395 = smul.u32 4, %s14
        %p396 = scmp.lt.s32.totalorder %s395, 15
        %s397 = scalar_select %p396, %s395, 15
        %s398 = smul.addr %s397, 4
        %s399 = scalar_lea.vmem %s2, %s398
      $region40: #{tpu_custom_call.1} parent=35 // pred_fallthru
        _
    $region36: #{tpu_custom_call.1} parent=5 // pred_fallthru
      _
  $region6: #{tpu_custom_call.1} parent=0 // loop_footer
    %s12 = sadd.s32 1, %s8
  $region7: #{tpu_custom_call.1} parent=0 // loop_footer_branch
    %7 = sbr.rel target = $region3
  $region8: #{tpu_custom_call.1} parent=0 // loop_exit
    _

</llo_original>
